<compile_context>
chip_gen: v7x
topology: tpu7x:2x2x1
jax: 0.10.0
libtpu: 0.0.40
codegen_flags: <defaults>
</compile_context>

<pallas_src>
import functools

import jax
import jax.numpy as jnp
import numpy as np
from jax import lax
from jax.experimental import pallas as pl
from jax.experimental.pallas import tpu as pltpu


_SQRT_HALF = np.float32(1.0 / np.sqrt(2.0))


def _gelu(x):
    # BERT / ROSITA gelu: x * 0.5 * (1 + erf(x / sqrt(2)))
    return x * 0.5 * (1.0 + lax.erf(x * _SQRT_HALF))


def _round_up(x, m):
    return (x + m - 1) // m * m


def _vmem_capacity_bytes():
    """Per-core VMEM capacity; conservative 64 MiB (v7x per-TC) if query fails."""
    try:
        return int(pltpu.get_tpu_info().vmem_capacity_bytes)
    except Exception:
        return 64 * 1024 * 1024


def mlm_head_kernel(x_ref, wd_ref, bd_ref, gamma_ref, beta_ref,
                    et_ref, bias_ref, out_ref, h_scratch):
    """Grid = (row tiles i, vocab tiles j).

    Invariant: j (vocab) MUST be the inner, sequentially executed axis and be
    marked "arbitrary" -- h_scratch is written at j == 0 and read for all j of
    the same row tile. i is independent and may be sharded across cores
    ("parallel").
    """
    @pl.when(pl.program_id(1) == 0)
    def _():
        # bf16 x bf16 -> f32 dense matmul; bias / gelu / LayerNorm kept in f32.
        # Runs once per row tile; cost amortized over all vocab tiles.
        h = jnp.dot(x_ref[...], wd_ref[...],
                    preferred_element_type=jnp.float32) + bd_ref[...]
        h = _gelu(h)
        mu = jnp.mean(h, axis=-1, keepdims=True)
        # Single-pass variance: E[h^2] - mu^2 (one fewer XLU reduction pass).
        var = jnp.maximum(jnp.mean(h * h, axis=-1, keepdims=True) - mu * mu,
                          np.float32(0.0))
        h_hat = (h - mu) * lax.rsqrt(var + np.float32(1e-12))
        # Store the normalized hidden state as bf16: feeds the MXU at bf16
        # rate and halves the scratch footprint.
        h_scratch[...] = (gamma_ref[...] * h_hat + beta_ref[...]).astype(h_scratch.dtype)

    # Decode: bf16 x bf16 -> f32 accumulation on the MXU.
    pred = jnp.dot(h_scratch[...], et_ref[...],
                   preferred_element_type=jnp.float32) + bias_ref[...]
    out_ref[...] = pred.astype(out_ref.dtype)


@functools.partial(jax.jit,
                   static_argnames=("tn", "tv", "vmem_limit", "out_dtype"))
def _text_mlm_head_impl(x, dense_w, dense_b, ln_gamma, ln_beta, emb_w, out_bias,
                        *, tn, tv, vmem_limit, out_dtype):
    B, S, H = x.shape
    V = emb_w.shape[0]
    N = B * S
    Np = _round_up(N, tn)
    Vp = _round_up(V, tv)

    # bf16 activations / weights for the MXU; f32 accumulation inside.
    x2 = x.reshape(N, H).astype(jnp.bfloat16)
    if Np != N:
        x2 = jnp.pad(x2, ((0, Np - N), (0, 0)))

    wd_t = dense_w.T.astype(jnp.bfloat16)               # [H, H]   bf16
    bd = dense_b.reshape(1, H).astype(jnp.float32)
    gamma = ln_gamma.reshape(1, H).astype(jnp.float32)
    beta = ln_beta.reshape(1, H).astype(jnp.float32)

    et = emb_w.T.astype(jnp.bfloat16)                    # [H, V]   bf16 stream
    bias = out_bias.reshape(1, V).astype(jnp.float32)    # added in f32
    if Vp != V:
        et = jnp.pad(et, ((0, 0), (0, Vp - V)))
        bias = jnp.pad(bias, ((0, 0), (0, Vp - V)))

    grid = (Np // tn, Vp // tv)

    out = pl.pallas_call(
        mlm_head_kernel,
        out_shape=jax.ShapeDtypeStruct((Np, Vp), out_dtype),
        grid_spec=pltpu.PrefetchScalarGridSpec(
            num_scalar_prefetch=0,
            grid=grid,
            in_specs=[
                pl.BlockSpec((tn, H), lambda i, j: (i, 0)),   # x rows (bf16)
                pl.BlockSpec((H, H), lambda i, j: (0, 0)),    # dense weight^T (bf16)
                pl.BlockSpec((1, H), lambda i, j: (0, 0)),    # dense bias
                pl.BlockSpec((1, H), lambda i, j: (0, 0)),    # LN gamma
                pl.BlockSpec((1, H), lambda i, j: (0, 0)),    # LN beta
                # E^T vocab tile (bf16 stream). Keep default 2-deep buffering:
                # kernel is HBM-bandwidth-bound, deeper buffering only eats
                # VMEM that is better spent on a larger tn.
                pl.BlockSpec((H, tv), lambda i, j: (0, j)),
                pl.BlockSpec((1, tv), lambda i, j: (0, j)),   # output bias tile
            ],
            out_specs=pl.BlockSpec((tn, tv), lambda i, j: (i, j)),
            scratch_shapes=[pltpu.VMEM((tn, H), jnp.bfloat16)],
        ),
        compiler_params=pltpu.CompilerParams(
            # i: independent row tiles -> shard across v7x's 2 TCs.
            # j: MUST stay "arbitrary" (sequential) -- h_scratch dependency.
            dimension_semantics=("parallel", "arbitrary"),
            vmem_limit_bytes=vmem_limit,
        ),
    )(x2, wd_t, bd, gamma, beta, et, bias)

    return out[:N, :V].reshape(B, S, V)


def text_mlm_head(x, dense_w, dense_b, ln_gamma, ln_beta, emb_w, out_bias,
                  *, tn=None, tv=None, out_dtype=None):
    """x: [B, S, H] float32. emb_w: [V, H] (decode weight = embedding weights).

    out_dtype: defaults to x.dtype (f32 parity); pass jnp.bfloat16 to halve the
    logits writeback stream if the downstream loss tolerates it.
    """
    B, S, H = x.shape
    V = emb_w.shape[0]
    N = B * S
    out_dtype = jnp.dtype(x.dtype if out_dtype is None else out_dtype)

    # Generation-aware defaults: bigger tiles on 128 MiB parts (v5e/v6e),
    # a 64-MiB-honest budget on v7x.
    vmem_cap = _vmem_capacity_bytes()
    big_vmem = vmem_cap >= 96 * 1024 * 1024
    if tn is None:
        tn = 1024 if big_vmem else 512
    if tv is None:
        tv = 2048 if big_vmem else 1024

    # Clamp tile sizes to the (padded) problem size, respecting (8, 128) tiling.
    n_pad8 = _round_up(N, 8)
    tn_eff = min(tn, n_pad8)
    # Ensure >= 2 row tiles whenever N allows so the "parallel" row axis keeps
    # both v7x TensorCores busy (and costs nothing on single-TC chips).
    if n_pad8 // tn_eff < 2 and n_pad8 >= 16:
        tn_eff = _round_up(-(-n_pad8 // 2), 8)
    tv_eff = min(tv, _round_up(V, 128))

    # Double-buffered working-set estimate (bytes) for vmem_limit_bytes.
    out_itemsize = out_dtype.itemsize
    vmem_est = (
        2 * tn_eff * H * 2                      # x row tiles (bf16)
        + 2 * H * H * 2                         # dense weight^T (bf16, const block)
        + 3 * 2 * H * 4                         # dense bias / gamma / beta (f32)
        + 2 * H * tv_eff * 2                    # E^T vocab tiles (bf16) - dominant
        + 2 * tv_eff * 4                        # output bias tiles (f32)
        + 2 * tn_eff * tv_eff * out_itemsize    # output tiles
        + tn_eff * H * 2                        # h_scratch (bf16)
    )
    vmem_budget = (100 * 1024 * 1024) if big_vmem else (52 * 1024 * 1024)
    vmem_limit = int(min(max(int(vmem_est * 1.25), 32 * 1024 * 1024), vmem_budget))

    return _text_mlm_head_impl(
        x, dense_w, dense_b, ln_gamma, ln_beta, emb_w, out_bias,
        tn=int(tn_eff), tv=int(tv_eff), vmem_limit=vmem_limit,
        out_dtype=out_dtype)


def _reference(x, dense_w, dense_b, ln_gamma, ln_beta, emb_w, out_bias):
    h = jnp.einsum("bsh,oh->bso", x, dense_w) + dense_b
    h = _gelu(h)
    mu = jnp.mean(h, axis=-1, keepdims=True)
    var = jnp.mean((h - mu) ** 2, axis=-1, keepdims=True)
    h = (h - mu) / jnp.sqrt(var + 1e-12)
    h = ln_gamma * h + ln_beta
    return jnp.einsum("bsh,vh->bsv", h, emb_w) + out_bias


def _run_case(key, B, S, H, V):
    ks = jax.random.split(key, 6)
    x = jax.random.normal(ks[0], (B, S, H), dtype=jnp.float32)
    dense_w = jax.random.normal(ks[1], (H, H), dtype=jnp.float32) * 0.05
    dense_b = jax.random.normal(ks[2], (H,), dtype=jnp.float32) * 0.05
    ln_gamma = jnp.ones((H,), dtype=jnp.float32)
    ln_beta = jnp.zeros((H,), dtype=jnp.float32)
    emb_w = jax.random.normal(ks[3], (V, H), dtype=jnp.float32) * 0.05
    out_bias = jax.random.normal(ks[4], (V,), dtype=jnp.float32) * 0.05

    pred = text_mlm_head(x, dense_w, dense_b, ln_gamma, ln_beta, emb_w, out_bias)
    pred = jax.block_until_ready(pred)

    ref = _reference(x, dense_w, dense_b, ln_gamma, ln_beta, emb_w, out_bias)
    # Tolerance reflects the deliberate bf16 operands (x, dense weight, E^T,
    # normalized hidden state) with f32 accumulation.
    np.testing.assert_allclose(np.asarray(pred), np.asarray(ref),
                               rtol=2.5e-2, atol=2e-2)
    assert pred.shape == (B, S, V)


if __name__ == "__main__":
    key = jax.random.PRNGKey(0)

    # Toy shape consistent with the module (HSIZE=32, vocab=256).
    _run_case(key, B=2, S=8, H=32, V=256)

    # Non-divisible N and V exercise the padding path (N=14 rows, V=300).
    _run_case(jax.random.PRNGKey(0), B=2, S=7, H=32, V=300)

    print("KERNEL_OK")
</pallas_src>

<mosaic_0001>
module attributes {stable_mosaic.version = 11 : i64} {
  func.func @mlm_head_kernel(%arg0: i32, %arg1: i32, %arg2: memref<8x32xbf16, #tpu.memory_space<vmem>>, %arg3: memref<32x32xbf16, #tpu.memory_space<vmem>>, %arg4: memref<1x32xf32, #tpu.memory_space<vmem>>, %arg5: memref<1x32xf32, #tpu.memory_space<vmem>>, %arg6: memref<1x32xf32, #tpu.memory_space<vmem>>, %arg7: memref<32x256xbf16, #tpu.memory_space<vmem>>, %arg8: memref<1x256xf32, #tpu.memory_space<vmem>>, %arg9: memref<8x256xf32, #tpu.memory_space<vmem>>, %arg10: memref<8x32xbf16, #tpu.memory_space<vmem>>) attributes {dimension_semantics = [#tpu.dimension_semantics<parallel>, #tpu.dimension_semantics<arbitrary>], iteration_bounds = array<i64: 2, 1>, scalar_prefetch = 0 : i64, scratch_operands = 1 : i64, tpu.core_type = #tpu.core_type<tc>, window_params = [{transform_indices = @transform_0, window_bounds = array<i64: 8, 32>}, {pipeline_mode = #tpu.pipeline_mode<synchronous>, transform_indices = @transform_1, window_bounds = array<i64: 32, 32>}, {pipeline_mode = #tpu.pipeline_mode<synchronous>, transform_indices = @transform_2, window_bounds = array<i64: 1, 32>}, {pipeline_mode = #tpu.pipeline_mode<synchronous>, transform_indices = @transform_3, window_bounds = array<i64: 1, 32>}, {pipeline_mode = #tpu.pipeline_mode<synchronous>, transform_indices = @transform_4, window_bounds = array<i64: 1, 32>}, {transform_indices = @transform_5, window_bounds = array<i64: 32, 256>}, {transform_indices = @transform_6, window_bounds = array<i64: 1, 256>}, {transform_indices = @transform_7, window_bounds = array<i64: 8, 256>}]} {
    %c0_i32 = arith.constant 0 : i32
    %0 = arith.cmpi eq, %arg1, %c0_i32 : i32
    %1 = arith.extui %0 : i1 to i32
    %c0_i32_0 = arith.constant 0 : i32
    %2 = arith.cmpi ne, %1, %c0_i32_0 : i32
    scf.if %2 {
      %c0_8 = arith.constant 0 : index
      %c0_9 = arith.constant 0 : index
      %10 = vector.load %arg2[%c0_8, %c0_9] : memref<8x32xbf16, #tpu.memory_space<vmem>>, vector<8x32xbf16>
      %c0_10 = arith.constant 0 : index
      %c0_11 = arith.constant 0 : index
      %11 = vector.load %arg3[%c0_10, %c0_11] : memref<32x32xbf16, #tpu.memory_space<vmem>>, vector<32x32xbf16>
      %cst_12 = arith.constant dense<0.000000e+00> : vector<8x32xf32>
      %12 = tpu.matmul %10, %11, %cst_12 {dimension_numbers = #tpu.dot_dimension_numbers<[1], [0], [0], [1], [0, 0, 1, 1], [], []>} : vector<8x32xbf16>, vector<32x32xbf16>, vector<8x32xf32> -> vector<8x32xf32>
      %c0_13 = arith.constant 0 : index
      %c0_14 = arith.constant 0 : index
      %13 = vector.load %arg4[%c0_13, %c0_14] : memref<1x32xf32, #tpu.memory_space<vmem>>, vector<1x32xf32>
      %14 = vector.broadcast %13 : vector<1x32xf32> to vector<8x32xf32>
      %15 = arith.addf %12, %14 : vector<8x32xf32>
      %cst_15 = arith.constant 5.000000e-01 : f32
      %16 = vector.broadcast %cst_15 : f32 to vector<8x32xf32>
      %17 = arith.mulf %15, %16 : vector<8x32xf32>
      %cst_16 = arith.constant 0.707106769 : f32
      %18 = vector.broadcast %cst_16 : f32 to vector<8x32xf32>
      %19 = arith.mulf %15, %18 : vector<8x32xf32>
      %20 = math.erf %19 : vector<8x32xf32>
      %cst_17 = arith.constant 1.000000e+00 : f32
      %21 = vector.broadcast %cst_17 : f32 to vector<8x32xf32>
      %22 = arith.addf %21, %20 : vector<8x32xf32>
      %23 = arith.mulf %17, %22 : vector<8x32xf32>
      %cst_18 = arith.constant dense<0.000000e+00> : vector<8xf32>
      %24 = vector.multi_reduction <add>, %23, %cst_18 [1] : vector<8x32xf32> to vector<8xf32>
      %25 = vector.shape_cast %24 : vector<8xf32> to vector<8x1xf32>
      %cst_19 = arith.constant 3.200000e+01 : f32
      %26 = vector.broadcast %cst_19 : f32 to vector<8x1xf32>
      %27 = arith.divf %25, %26 : vector<8x1xf32>
      %28 = arith.mulf %23, %23 : vector<8x32xf32>
      %cst_20 = arith.constant dense<0.000000e+00> : vector<8xf32>
      %29 = vector.multi_reduction <add>, %28, %cst_20 [1] : vector<8x32xf32> to vector<8xf32>
      %30 = vector.shape_cast %29 : vector<8xf32> to vector<8x1xf32>
      %cst_21 = arith.constant 3.200000e+01 : f32
      %31 = vector.broadcast %cst_21 : f32 to vector<8x1xf32>
      %32 = arith.divf %30, %31 : vector<8x1xf32>
      %33 = arith.mulf %27, %27 : vector<8x1xf32>
      %34 = arith.subf %32, %33 : vector<8x1xf32>
      %cst_22 = arith.constant 0.000000e+00 : f32
      %35 = vector.broadcast %cst_22 : f32 to vector<8x1xf32>
      %36 = arith.maximumf %34, %35 : vector<8x1xf32>
      %37 = vector.broadcast %27 : vector<8x1xf32> to vector<8x32xf32>
      %38 = arith.subf %23, %37 : vector<8x32xf32>
      %cst_23 = arith.constant 9.99999996E-13 : f32
      %39 = vector.broadcast %cst_23 : f32 to vector<8x1xf32>
      %40 = arith.addf %36, %39 : vector<8x1xf32>
      %41 = math.rsqrt %40 : vector<8x1xf32>
      %42 = vector.broadcast %41 : vector<8x1xf32> to vector<8x32xf32>
      %43 = arith.mulf %38, %42 : vector<8x32xf32>
      %c0_24 = arith.constant 0 : index
      %c0_25 = arith.constant 0 : index
      %44 = vector.load %arg5[%c0_24, %c0_25] : memref<1x32xf32, #tpu.memory_space<vmem>>, vector<1x32xf32>
      %45 = vector.broadcast %44 : vector<1x32xf32> to vector<8x32xf32>
      %46 = arith.mulf %45, %43 : vector<8x32xf32>
      %c0_26 = arith.constant 0 : index
      %c0_27 = arith.constant 0 : index
      %47 = vector.load %arg6[%c0_26, %c0_27] : memref<1x32xf32, #tpu.memory_space<vmem>>, vector<1x32xf32>
      %48 = vector.broadcast %47 : vector<1x32xf32> to vector<8x32xf32>
      %49 = arith.addf %46, %48 : vector<8x32xf32>
      %50 = arith.truncf %49 : vector<8x32xf32> to vector<8x32xbf16>
      %c0_28 = arith.constant 0 : index
      %c0_29 = arith.constant 0 : index
      %51 = vector.load %arg10[%c0_28, %c0_29] : memref<8x32xbf16, #tpu.memory_space<vmem>>, vector<8x32xbf16>
      tpu.vector_store %arg10[%c0_28, %c0_29], %50 {strides = array<i32>} : memref<8x32xbf16, #tpu.memory_space<vmem>>, vector<8x32xbf16>,
    } else {
    }
    %c0 = arith.constant 0 : index
    %c0_1 = arith.constant 0 : index
    %3 = vector.load %arg10[%c0, %c0_1] : memref<8x32xbf16, #tpu.memory_space<vmem>>, vector<8x32xbf16>
    %c0_2 = arith.constant 0 : index
    %c0_3 = arith.constant 0 : index
    %4 = vector.load %arg7[%c0_2, %c0_3] : memref<32x256xbf16, #tpu.memory_space<vmem>>, vector<32x256xbf16>
    %cst = arith.constant dense<0.000000e+00> : vector<8x256xf32>
    %5 = tpu.matmul %3, %4, %cst {dimension_numbers = #tpu.dot_dimension_numbers<[1], [0], [0], [1], [0, 0, 1, 1], [], []>} : vector<8x32xbf16>, vector<32x256xbf16>, vector<8x256xf32> -> vector<8x256xf32>
    %c0_4 = arith.constant 0 : index
    %c0_5 = arith.constant 0 : index
    %6 = vector.load %arg8[%c0_4, %c0_5] : memref<1x256xf32, #tpu.memory_space<vmem>>, vector<1x256xf32>
    %7 = vector.broadcast %6 : vector<1x256xf32> to vector<8x256xf32>
    %8 = arith.addf %5, %7 : vector<8x256xf32>
    %c0_6 = arith.constant 0 : index
    %c0_7 = arith.constant 0 : index
    %9 = vector.load %arg9[%c0_6, %c0_7] : memref<8x256xf32, #tpu.memory_space<vmem>>, vector<8x256xf32>
    tpu.vector_store %arg9[%c0_6, %c0_7], %8 {strides = array<i32>} : memref<8x256xf32, #tpu.memory_space<vmem>>, vector<8x256xf32>,
    return
  }
  func.func @transform_0(%arg0: i32, %arg1: i32) -> (i32, i32) {
    %c0_i32 = arith.constant 0 : i32
    %c0_i32_0 = arith.constant 0 : i32
    return %arg0, %c0_i32 : i32, i32
  }
  func.func @transform_1(%arg0: i32, %arg1: i32) -> (i32, i32) {
    %c0_i32 = arith.constant 0 : i32
    %c0_i32_0 = arith.constant 0 : i32
    %c0_i32_1 = arith.constant 0 : i32
    return %c0_i32, %c0_i32_0 : i32, i32
  }
  func.func @transform_2(%arg0: i32, %arg1: i32) -> (i32, i32) {
    %c0_i32 = arith.constant 0 : i32
    %c0_i32_0 = arith.constant 0 : i32
    %c0_i32_1 = arith.constant 0 : i32
    return %c0_i32, %c0_i32_0 : i32, i32
  }
  func.func @transform_3(%arg0: i32, %arg1: i32) -> (i32, i32) {
    %c0_i32 = arith.constant 0 : i32
    %c0_i32_0 = arith.constant 0 : i32
    %c0_i32_1 = arith.constant 0 : i32
    return %c0_i32, %c0_i32_0 : i32, i32
  }
  func.func @transform_4(%arg0: i32, %arg1: i32) -> (i32, i32) {
    %c0_i32 = arith.constant 0 : i32
    %c0_i32_0 = arith.constant 0 : i32
    %c0_i32_1 = arith.constant 0 : i32
    return %c0_i32, %c0_i32_0 : i32, i32
  }
  func.func @transform_5(%arg0: i32, %arg1: i32) -> (i32, i32) {
    %c0_i32 = arith.constant 0 : i32
    %c0_i32_0 = arith.constant 0 : i32
    return %c0_i32, %arg1 : i32, i32
  }
  func.func @transform_6(%arg0: i32, %arg1: i32) -> (i32, i32) {
    %c0_i32 = arith.constant 0 : i32
    %c0_i32_0 = arith.constant 0 : i32
    return %c0_i32, %arg1 : i32, i32
  }
  func.func @transform_7(%arg0: i32, %arg1: i32) -> (i32, i32) {
    %c0_i32 = arith.constant 0 : i32
    return %arg0, %arg1 : i32, i32
  }
}

</mosaic_0001>

<llo_original>
// kernel: _text_mlm_head_impl.1
$region0: #{_text_mlm_head_impl.1}
  #allocation0 [shape = 'u32[]', space=smem, size = 0x4, offset = 0x4, fixed_abs, tag = 'smem constant byte address 0x4 - core index']
  #allocation1 [shape = 'u32[144,128]{1,0:T(1,128)}', space=vmem, size = 0x12000, scoped, tag = 'internal scratch']
  #allocation2 [shape = 'bf16[8,32]{1,0:T(8,128)(2,1)}', space=vmem, size = 0x800, scoped, tag = 'scratch operand']
  %s0 = inlined_call_operand.vmem [shape: bf16[16,32], index: 0, kind: input, shape index: {}]
  %s1 = inlined_call_operand.vmem [shape: bf16[32,32], index: 1, kind: input, shape index: {}]
  %s2 = inlined_call_operand.vmem [shape: f32[1,32], index: 2, kind: input, shape index: {}]
  %s3 = inlined_call_operand.vmem [shape: f32[1,32], index: 3, kind: input, shape index: {}]
  %s4 = inlined_call_operand.vmem [shape: f32[1,32], index: 4, kind: input, shape index: {}]
  %s5 = inlined_call_operand.vmem [shape: bf16[32,256], index: 5, kind: input, shape index: {}]
  %s6 = inlined_call_operand.vmem [shape: f32[1,256], index: 6, kind: input, shape index: {}]
  %s7 = inlined_call_operand.hbm [shape: f32[16,256], index: 7, kind: output, shape index: {}]
  %s8 = sld [smem:[#allocation0]]
  $region65: #{_text_mlm_head_impl.1} parent=0
    _
  %s10 = ssub.s32 1, %s8
  %s11 = scalar_select 0, %s10, %s8
  $region1: #{_text_mlm_head_impl.1} parent=0
    #allocation3 [shape = 'u8[16384]{0}', space=vmem, size = 0x4000, scoped, tag = 'output window, operand 0']
    #allocation4 [shape = 's32[2]{0}', space=sflag, size = 0x8, scoped, tag = 'scoped memory for _text_mlm_head_impl.1']
    %12 = vsyncpa [#allocation4], 0
    %s13 = scalar_lea.sflag [#allocation4], 1
    %14 = vsyncpa %s13, 0
    loop: start=0, step=1, limit=4
    $region2: #{_text_mlm_head_impl.1} parent=1 // loop_pre_header
      _
    $region3: #{_text_mlm_head_impl.1} parent=1 // loop_header
      %s16 = sphi 0, %s20
      %p17 = scmp.ge.s32.totalorder %s16, 4
      %s23 = sphi 0, %s35
      %s24 = sphi 0, %s31
      %s25 = sphi 0, %s23
      %s26 = sphi 0, %s24
      %s27 = sphi 0, %s25
      %s28 = sphi 0, %s26
      %s38 = sphi 0, %s40
      %s41 = sphi 0, %s38
      %s42 = sphi 0, %s41
      %s58 = sphi 0, %s42
      %s62 = sphi 0, %s62
      %s64 = sphi 0, %s62
      %s65 = sphi 0, %s64
      %s79 = sphi 0, %s65
      %s83 = sphi 0, %s83
      %s85 = sphi 0, %s83
      %s86 = sphi 0, %s85
      %s100 = sphi 0, %s86
      %s104 = sphi 0, %s104
      %s106 = sphi 0, %s104
      %s107 = sphi 0, %s106
      %s121 = sphi 0, %s107
      %s125 = sphi 0, %s125
      %s127 = sphi 0, %s125
      %s128 = sphi 0, %s127
      %s142 = sphi 0, %s128
      %s148 = sphi 0, %s150
      %s151 = sphi 0, %s148
      %s152 = sphi 0, %s151
      %s168 = sphi 0, %s152
      %s174 = sphi 0, %s176
      %s177 = sphi 0, %s174
      %s178 = sphi 0, %s177
      %s194 = sphi 0, %s178
      %s202 = sphi 0, %s204
      %s205 = sphi 0, %s202
      %s206 = sphi 0, %s205
      %s222 = sphi 0, %s206
    $region4: #{_text_mlm_head_impl.1} parent=1 // loop_header_branch
      %19 = sbr.rel (%p17) target = $region8
    $region5: #{_text_mlm_head_impl.1} parent=1 // loop_body
      %s21 = ssub.s32 %s16, 1
      %s22 = ssub.s32 %s16, 2
      %s29 = sadd.s32 1, %s24
      %p30 = scmp.ge.s32.totalorder %s29, 1
      %s31 = scalar_select %p30, 0, %s29
      %s32 = sadd.s32 1, %s23
      %s33 = scalar_select %p30, %s32, %s23
      %p34 = scmp.ge.s32.totalorder %s33, 2
      %s35 = scalar_select %p34, 0, %s33
      %s36 = ssub.s32 %s23, %s35
      %p37 = scmp.eq.s32.totalorder %s36, 0
      %s39 = sadd.s32 %s38, 1
      %s40 = scalar_select %p37, %s38, %s39
      %p43 = pneg %p37
      %p44 = scmp.eq.s32.totalorder %s16, 1
      %p45 = por %p43, %p44
      %p46 = scmp.ne.s32.totalorder %s38, %s41
      %p47 = scmp.eq.s32.totalorder %s16, 0
      %p48 = por %p46, %p47
      %p49 = scmp.ne.s32.totalorder %s38, %s41
      %p50 = scmp.eq.s32.totalorder %s21, 1
      %p51 = por %p49, %p50
      %p52 = scmp.ne.s32.totalorder %s41, %s42
      %p53 = scmp.eq.s32.totalorder %s21, 0
      %p54 = por %p52, %p53
      %p55 = scmp.ne.s32.totalorder %s41, %s42
      %p56 = scmp.eq.s32.totalorder %s22, 1
      %p57 = por %p55, %p56
      %p59 = scmp.ne.s32.totalorder %s42, %s58
      %p60 = scmp.eq.s32.totalorder %s22, 0
      %p61 = por %p59, %p60
      %s63 = sadd.s32 %s62, 1
      %p66 = scmp.eq.s32.totalorder %s16, 1
      %p67 = scmp.ne.s32.totalorder %s62, %s64
      %p68 = scmp.eq.s32.totalorder %s16, 0
      %p69 = por %p67, %p68
      %p70 = scmp.ne.s32.totalorder %s62, %s64
      %p71 = scmp.eq.s32.totalorder %s21, 1
      %p72 = por %p70, %p71
      %p73 = scmp.ne.s32.totalorder %s64, %s65
      %p74 = scmp.eq.s32.totalorder %s21, 0
      %p75 = por %p73, %p74
      %p76 = scmp.ne.s32.totalorder %s64, %s65
      %p77 = scmp.eq.s32.totalorder %s22, 1
      %p78 = por %p76, %p77
      %p80 = scmp.ne.s32.totalorder %s65, %s79
      %p81 = scmp.eq.s32.totalorder %s22, 0
      %p82 = por %p80, %p81
      %s84 = sadd.s32 %s83, 1
      %p87 = scmp.eq.s32.totalorder %s16, 1
      %p88 = scmp.ne.s32.totalorder %s83, %s85
      %p89 = scmp.eq.s32.totalorder %s16, 0
      %p90 = por %p88, %p89
      %p91 = scmp.ne.s32.totalorder %s83, %s85
      %p92 = scmp.eq.s32.totalorder %s21, 1
      %p93 = por %p91, %p92
      %p94 = scmp.ne.s32.totalorder %s85, %s86
      %p95 = scmp.eq.s32.totalorder %s21, 0
      %p96 = por %p94, %p95
      %p97 = scmp.ne.s32.totalorder %s85, %s86
      %p98 = scmp.eq.s32.totalorder %s22, 1
      %p99 = por %p97, %p98
      %p101 = scmp.ne.s32.totalorder %s86, %s100
      %p102 = scmp.eq.s32.totalorder %s22, 0
      %p103 = por %p101, %p102
      %s105 = sadd.s32 %s104, 1
      %p108 = scmp.eq.s32.totalorder %s16, 1
      %p109 = scmp.ne.s32.totalorder %s104, %s106
      %p110 = scmp.eq.s32.totalorder %s16, 0
      %p111 = por %p109, %p110
      %p112 = scmp.ne.s32.totalorder %s104, %s106
      %p113 = scmp.eq.s32.totalorder %s21, 1
      %p114 = por %p112, %p113
      %p115 = scmp.ne.s32.totalorder %s106, %s107
      %p116 = scmp.eq.s32.totalorder %s21, 0
      %p117 = por %p115, %p116
      %p118 = scmp.ne.s32.totalorder %s106, %s107
      %p119 = scmp.eq.s32.totalorder %s22, 1
      %p120 = por %p118, %p119
      %p122 = scmp.ne.s32.totalorder %s107, %s121
      %p123 = scmp.eq.s32.totalorder %s22, 0
      %p124 = por %p122, %p123
      %s126 = sadd.s32 %s125, 1
      %p129 = scmp.eq.s32.totalorder %s16, 1
      %p130 = scmp.ne.s32.totalorder %s125, %s127
      %p131 = scmp.eq.s32.totalorder %s16, 0
      %p132 = por %p130, %p131
      %p133 = scmp.ne.s32.totalorder %s125, %s127
      %p134 = scmp.eq.s32.totalorder %s21, 1
      %p135 = por %p133, %p134
      %p136 = scmp.ne.s32.totalorder %s127, %s128
      %p137 = scmp.eq.s32.totalorder %s21, 0
      %p138 = por %p136, %p137
      %p139 = scmp.ne.s32.totalorder %s127, %s128
      %p140 = scmp.eq.s32.totalorder %s22, 1
      %p141 = por %p139, %p140
      %p143 = scmp.ne.s32.totalorder %s128, %s142
      %p144 = scmp.eq.s32.totalorder %s22, 0
      %p145 = por %p143, %p144
      %s146 = ssub.s32 %s24, %s31
      %p147 = scmp.eq.s32.totalorder %s146, 0
      %s149 = sadd.s32 %s148, 1
      %s150 = scalar_select %p147, %s148, %s149
      %p153 = pneg %p147
      %p154 = scmp.eq.s32.totalorder %s16, 1
      %p155 = por %p153, %p154
      %p156 = scmp.ne.s32.totalorder %s148, %s151
      %p157 = scmp.eq.s32.totalorder %s16, 0
      %p158 = por %p156, %p157
      %p159 = scmp.ne.s32.totalorder %s148, %s151
      %p160 = scmp.eq.s32.totalorder %s21, 1
      %p161 = por %p159, %p160
      %p162 = scmp.ne.s32.totalorder %s151, %s152
      %p163 = scmp.eq.s32.totalorder %s21, 0
      %p164 = por %p162, %p163
      %p165 = scmp.ne.s32.totalorder %s151, %s152
      %p166 = scmp.eq.s32.totalorder %s22, 1
      %p167 = por %p165, %p166
      %p169 = scmp.ne.s32.totalorder %s152, %s168
      %p170 = scmp.eq.s32.totalorder %s22, 0
      %p171 = por %p169, %p170
      %s172 = ssub.s32 %s24, %s31
      %p173 = scmp.eq.s32.totalorder %s172, 0
      %s175 = sadd.s32 %s174, 1
      %s176 = scalar_select %p173, %s174, %s175
      %p179 = pneg %p173
      %p180 = scmp.eq.s32.totalorder %s16, 1
      %p181 = por %p179, %p180
      %p182 = scmp.ne.s32.totalorder %s174, %s177
      %p183 = scmp.eq.s32.totalorder %s16, 0
      %p184 = por %p182, %p183
      %p185 = scmp.ne.s32.totalorder %s174, %s177
      %p186 = scmp.eq.s32.totalorder %s21, 1
      %p187 = por %p185, %p186
      %p188 = scmp.ne.s32.totalorder %s177, %s178
      %p189 = scmp.eq.s32.totalorder %s21, 0
      %p190 = por %p188, %p189
      %p191 = scmp.ne.s32.totalorder %s177, %s178
      %p192 = scmp.eq.s32.totalorder %s22, 1
      %p193 = por %p191, %p192
      %p195 = scmp.ne.s32.totalorder %s178, %s194
      %p196 = scmp.eq.s32.totalorder %s22, 0
      %p197 = por %p195, %p196
      %s198 = ssub.s32 %s23, %s35
      %s199 = ssub.s32 %s24, %s31
      %s200 = sor.u32 %s198, %s199
      %p201 = scmp.eq.s32.totalorder %s200, 0
      %s203 = sadd.s32 %s202, 1
      %s204 = scalar_select %p201, %s202, %s203
      %p207 = pneg %p201
      %p208 = scmp.eq.s32.totalorder %s16, 1
      %p209 = por %p207, %p208
      %p210 = scmp.ne.s32.totalorder %s202, %s205
      %p211 = scmp.eq.s32.totalorder %s16, 0
      %p212 = por %p210, %p211
      %p213 = scmp.ne.s32.totalorder %s202, %s205
      %p214 = scmp.eq.s32.totalorder %s21, 1
      %p215 = por %p213, %p214
      %p216 = scmp.ne.s32.totalorder %s205, %s206
      %p217 = scmp.eq.s32.totalorder %s21, 0
      %p218 = por %p216, %p217
      %p219 = scmp.ne.s32.totalorder %s205, %s206
      %p220 = scmp.eq.s32.totalorder %s22, 1
      %p221 = por %p219, %p220
      %p223 = scmp.ne.s32.totalorder %s206, %s222
      %p224 = scmp.eq.s32.totalorder %s22, 0
      %p225 = por %p223, %p224
      %p226 = scmp.le.s32.totalorder 1, %s16
      %p227 = scmp.lt.s32.totalorder %s16, 3
      %p228 = pnand %p226, %p227
      %p229 = pneg %p228
      // Predicated region
      $region9: #{_text_mlm_head_impl.1} parent=5 // pred_check
        _
      $region10: #{_text_mlm_head_impl.1} parent=5 // pred_check_branch
        %231 = sbr.rel (%p228) target = $region12
      $region11: #{_text_mlm_head_impl.1} parent=5 // pred_region
        %s232 = ssub.s32 %s16, 1
        // Predicated region
        $region13: #{_text_mlm_head_impl.1} parent=11 // pred_check
          %p233 = pneg %p75
        $region14: #{_text_mlm_head_impl.1} parent=11 // pred_check_branch
          %235 = sbr.rel (%p233) target = $region16
        $region15: #{_text_mlm_head_impl.1} parent=11 // pred_region
          _
        $region16: #{_text_mlm_head_impl.1} parent=11 // pred_fallthru
          _
        // Predicated region
        $region17: #{_text_mlm_head_impl.1} parent=11 // pred_check
          %p236 = pneg %p96
        $region18: #{_text_mlm_head_impl.1} parent=11 // pred_check_branch
          %238 = sbr.rel (%p236) target = $region20
        $region19: #{_text_mlm_head_impl.1} parent=11 // pred_region
          _
        $region20: #{_text_mlm_head_impl.1} parent=11 // pred_fallthru
          _
        // Predicated region
        $region21: #{_text_mlm_head_impl.1} parent=11 // pred_check
          %p239 = pneg %p117
        $region22: #{_text_mlm_head_impl.1} parent=11 // pred_check_branch
          %241 = sbr.rel (%p239) target = $region24
        $region23: #{_text_mlm_head_impl.1} parent=11 // pred_region
          _
        $region24: #{_text_mlm_head_impl.1} parent=11 // pred_fallthru
          _
        // Predicated region
        $region25: #{_text_mlm_head_impl.1} parent=11 // pred_check
          %p242 = pneg %p138
        $region26: #{_text_mlm_head_impl.1} parent=11 // pred_check_branch
          %244 = sbr.rel (%p242) target = $region28
        $region27: #{_text_mlm_head_impl.1} parent=11 // pred_region
          _
        $region28: #{_text_mlm_head_impl.1} parent=11 // pred_fallthru
          _
        // Predicated region
        $region29: #{_text_mlm_head_impl.1} parent=11 // pred_check
          %p245 = pneg %p164
        $region30: #{_text_mlm_head_impl.1} parent=11 // pred_check_branch
          %247 = sbr.rel (%p245) target = $region32
        $region31: #{_text_mlm_head_impl.1} parent=11 // pred_region
          %s248 = smul.u32 2, %s26
          %p249 = scmp.lt.s32.totalorder %s248, 1
          %s250 = scalar_select %p249, %s248, 1
          %s251 = smul.addr %s250, 4
          %s252 = scalar_lea.vmem %s5, %s251
          %s253 = smul.u32 2, %s26
        $region32: #{_text_mlm_head_impl.1} parent=11 // pred_fallthru
          _
        // Predicated region
        $region33: #{_text_mlm_head_impl.1} parent=11 // pred_check
          %p254 = pneg %p190
        $region34: #{_text_mlm_head_impl.1} parent=11 // pred_check_branch
          %256 = sbr.rel (%p254) target = $region36
        $region35: #{_text_mlm_head_impl.1} parent=11 // pred_region
          %s257 = smul.u32 2, %s26
          %p258 = scmp.lt.s32.totalorder %s257, 1
          %s259 = scalar_select %p258, %s257, 1
          %s260 = scalar_lea.vmem %s6, %s259
          %s261 = smul.u32 2, %s26
        $region36: #{_text_mlm_head_impl.1} parent=11 // pred_fallthru
          _
      $region12: #{_text_mlm_head_impl.1} parent=5 // pred_fallthru
        _
      %p262 = scmp.lt.s32.totalorder %s16, 2
      // Predicated region
      $region37: #{_text_mlm_head_impl.1} parent=5 // pred_check
        %p263 = pneg %p262
      $region38: #{_text_mlm_head_impl.1} parent=5 // pred_check_branch
        %265 = sbr.rel (%p263) target = $region40
      $region39: #{_text_mlm_head_impl.1} parent=5 // pred_region
        // Predicated region
        $region41: #{_text_mlm_head_impl.1} parent=39 // pred_check
          %p266 = pneg %p48
        $region42: #{_text_mlm_head_impl.1} parent=39 // pred_check_branch
          %268 = sbr.rel (%p266) target = $region44
        $region43: #{_text_mlm_head_impl.1} parent=39 // pred_region
          %p269 = scmp.lt.s32.totalorder %s23, 1
          %s270 = scalar_select %p269, %s23, 1
          %s271 = smul.addr %s270, 4
          %s272 = scalar_lea.vmem %s0, %s271
        $region44: #{_text_mlm_head_impl.1} parent=39 // pred_fallthru
          _
      $region40: #{_text_mlm_head_impl.1} parent=5 // pred_fallthru
        _
      %p273 = scmp.le.s32.totalorder 1, %s16
      %p274 = scmp.lt.s32.totalorder %s16, 3
      %p275 = pnand %p273, %p274
      %p276 = pneg %p275
      // Predicated region
      $region45: #{_text_mlm_head_impl.1} parent=5 // pred_check
        _
      $region46: #{_text_mlm_head_impl.1} parent=5 // pred_check_branch
        %278 = sbr.rel (%p275) target = $region48
      $region47: #{_text_mlm_head_impl.1} parent=5 // pred_region
        %s279 = ssub.s32 %s16, 1
        %p280 = scmp.lt.s32.totalorder %s25, 1
        %s281 = scalar_select %p280, %s25, 1
        %s282 = smul.addr %s281, 4
        %s283 = scalar_lea.vmem %s0, %s282
        %p284 = pneg %p54
        %p285 = pneg %p51
        %p286 = pneg %p75
        %p287 = pneg %p72
        %p288 = pneg %p96
        %p289 = pneg %p93
        %p290 = pneg %p117
        %p291 = pneg %p114
        %p292 = pneg %p138
        %p293 = pneg %p135
        %s294 = smul.u32 2, %s26
        %p295 = scmp.lt.s32.totalorder %s294, 1
        %s296 = scalar_select %p295, %s294, 1
        %s297 = smul.addr %s296, 4
        %s298 = scalar_lea.vmem %s5, %s297
        %p299 = pneg %p164
        %p300 = pneg %p161
        %s301 = smul.u32 2, %s26
        %p302 = scmp.lt.s32.totalorder %s301, 1
        %s303 = scalar_select %p302, %s301, 1
        %s304 = scalar_lea.vmem %s6, %s303
        %p305 = pneg %p190
        %p306 = pneg %p187
        %p307 = pneg %p218
        %p308 = pneg %p215
        %s309 = sand.u32 %s205, 1
        %s310 = scalar_lea.sflag [#allocation4], %s309
        %s311 = sand.u32 %s205, 1
        %s312 = smul.addr %s311, 16
        %s313 = scalar_lea.vmem [#allocation3], %s312
        %p314 = scmp.lt.s32.totalorder %s25, 1
        %s315 = scalar_select %p314, %s25, 1
        %s316 = smul.addr %s315, 4
        %s317 = scalar_lea.vmem %s0, %s316
        %s318 = smul.u32 2, %s26
        %p319 = scmp.lt.s32.totalorder %s318, 1
        %s320 = scalar_select %p319, %s318, 1
        %s321 = smul.addr %s320, 4
        %s322 = scalar_lea.vmem %s5, %s321
        %s323 = smul.u32 2, %s26
        %s324 = smul.u32 2, %s26
        %p325 = scmp.lt.s32.totalorder %s324, 1
        %s326 = scalar_select %p325, %s324, 1
        %s327 = scalar_lea.vmem %s6, %s326
        %s328 = smul.u32 2, %s26
        %s329 = smul.u32 2, %s26
        %p331 = scmp.eq.s32.totalorder %s26, 0
        // Predicated region
        $region49: #{_text_mlm_head_impl.1} parent=47 // pred_check
          %p332 = pneg %p331
        $region50: #{_text_mlm_head_impl.1} parent=47 // pred_check_branch
          %334 = sbr.rel (%p332) target = $region52
        $region51: #{_text_mlm_head_impl.1} parent=47 // pred_region
          %v335 = vld [vmem:[%s317] sm:$0xf]
          %v336 = vld [vmem:[%s1] sm:$0xf]
          %v337 = vld [vmem:[%s1 + $0x4] sm:$0xf]
          %v338 = vld [vmem:[%s1 + $0x8] sm:$0xf]
          %v339 = vld [vmem:[%s1 + $0xc] sm:$0xf]
          %v340 = vld [vmem:[%s2] sm:$0x1]
          %v342 = vlaneseq
          %v343 = vshrl.u32 %v342, 7
          %v344 = vsub.s32 0, %v343
          %v345 = vrot.slane %v340, %v344
          %v351 = vunpack.c.l.b16 %v336
          %v352 = vunpack.c.l.b16 %v337
          %v353 = vunpack.c.l.b16 %v338
          %v354 = vunpack.c.l.b16 %v339
          %v355 = vpack.c.b16 %v352, %v351
          %v356 = vpack.c.b16 %v354, %v353
          %vm359 = vcmask 261120
          %v361 = vsel %vm359, %v335, 0
          %363 = vmatprep.subr.bf16.mxu0 0
          %364 = vmatpush1.bf16.msra.mxu0 %v355
          %365 = vmatprep.subr.bf16.mxu0 0
          %366 = vmatpush1.bf16.msra.mxu0 %v356
          %367 = vmatprep.subr.bf16.mxu0 0
          %368 = vmatpush1.bf16.msra.mxu0 0
          %369 = vmatprep.subr.bf16.mxu0 0
          %370 = vmatpush1.bf16.msra.mxu0 0
          %371 = vmatprep.subr.bf16.mxu0 0
          %372 = vmatpush1.bf16.msra.mxu0 0
          %373 = vmatprep.subr.bf16.mxu0 0
          %374 = vmatpush1.bf16.msra.mxu0 0
          %375 = vmatprep.subr.bf16.mxu0 0
          %376 = vmatpush1.bf16.msra.mxu0 0
          %377 = vmatprep.subr.bf16.mxu0 0
          %378 = vmatpush1.bf16.msra.mxu0 0
          %379 = vmatprep.subr.bf16.mxu0 0
          %380 = vmatpush1.bf16.msra.mxu0 0
          %381 = vmatprep.subr.bf16.mxu0 0
          %382 = vmatpush1.bf16.msra.mxu0 0
          %383 = vmatprep.subr.bf16.mxu0 0
          %384 = vmatpush1.bf16.msra.mxu0 0
          %385 = vmatprep.subr.bf16.mxu0 0
          %386 = vmatpush1.bf16.msra.mxu0 0
          %387 = vmatprep.subr.bf16.mxu0 0
          %388 = vmatpush1.bf16.msra.mxu0 0
          %389 = vmatprep.subr.bf16.mxu0 0
          %390 = vmatpush1.bf16.msra.mxu0 0
          %391 = vmatprep.subr.bf16.mxu0 0
          %392 = vmatpush1.bf16.msra.mxu0 0
          %393 = vmatprep.subr.bf16.mxu0 0
          %394 = vmatpush1.bf16.msra.mxu0 0
          %395 = vmatprep.mubr.bf16.mxu0 0
          %396 = vmatmul.mubr.bf16.gmra.mrb[0].mxu0 %v361
          %v397 = vpop.f32.mrb[0].mxu0
          %v398 = vadd.f32 %v345, %v397
          %v399 = vpop.f32.mrb[0].mxu0
          %v400 = vpop.f32.mrb[0].mxu0
          %v401 = vpop.f32.mrb[0].mxu0
          %402 = vdwg.mxu0
          %v403 = vmul.f32 %v398, 0.5
          %v404 = vmul.f32 %v398, 0.70710677
          %v405 = verf.f32.pop %v404
          %v406 = vadd.f32 %v405, 1.0
          %v407 = vmul.f32 %v403, %v406
          %v408 = vsel %vm359, %v407, 0.0
          %409 = vadd.xlane.f32.xlu0 %v408
          %v410 = vpop.xlane.xlu0 %409
          %v411 = vrcp.pop 32.0
          %v412 = vmul.f32 %v410, %v411
          %v413 = vmul.f32 %v407, %v407
          %v414 = vsel %vm359, %v413, 0.0
          %415 = vadd.xlane.f32.xlu0 %v414
          %v416 = vpop.xlane.xlu0 %415
          %v417 = vmul.f32 %v416, %v411
          %v418 = vmul.f32 %v412, %v412
          %v419 = vsub.f32 %v417, %v418
          %v420 = vmax.f32 %v419, 0.0
          %v421 = vsub.f32 %v407, %v412
          %v422 = vadd.f32 %v420, 1e-12
          %v423 = vrsqrt.pop %v422
          %v424 = vmul.f32 %v421, %v423
          %v425 = vld [vmem:[%s3] sm:$0x1]
          %v427 = vlaneseq
          %v428 = vshrl.u32 %v427, 7
          %v429 = vsub.s32 0, %v428
          %v430 = vrot.slane %v425, %v429
          %v432 = vmul.f32 %v430, %v424
          %v433 = vld [vmem:[%s4] sm:$0x1]
          %v435 = vlaneseq
          %v436 = vshrl.u32 %v435, 7
          %v437 = vsub.s32 0, %v436
          %v438 = vrot.slane %v433, %v437
          %v440 = vadd.f32 %v432, %v438
          %v441 = vpack.c.bf16 %v440, %v440
          %vm442 = vcmask 257024
          %443 = vst.msk [vmem:[#allocation2] sm:$0xf] %vm442, %v441
        $region52: #{_text_mlm_head_impl.1} parent=47 // pred_fallthru
          _
        %v444 = vld [vmem:[#allocation2] sm:$0xf]
        %v445 = vld [vmem:[%s322] sm:$0xff]
        %v446 = vld [vmem:[%s322 + $0x8] sm:$0xff]
        %v447 = vld [vmem:[%s322 + $0x10] sm:$0xff]
        %v448 = vld [vmem:[%s322 + $0x18] sm:$0xff]
        %v449 = vld [vmem:[%s327] sm:$0x3]
        %v451 = vlaneseq
        %v452 = vshrl.u32 %v451, 7
        %v453 = vsub.s32 0, %v452
        %v454 = vrot.slane %v449, %v453
        %v455 = vlaneseq
        %v456 = vshrl.u32 %v455, 7
        %v457 = vsub.s32 1, %v456
        %v458 = vrot.slane %v449, %v457
        %v465 = vunpack.c.l.b16 %v445
        %v466 = vunpack.c.h.b16 %v445
        %v467 = vunpack.c.l.b16 %v446
        %v468 = vunpack.c.h.b16 %v446
        %v469 = vunpack.c.l.b16 %v447
        %v470 = vunpack.c.h.b16 %v447
        %v471 = vunpack.c.l.b16 %v448
        %v472 = vunpack.c.h.b16 %v448
        %v473 = vpack.c.b16 %v467, %v465
        %v474 = vpack.c.b16 %v468, %v466
        %v475 = vpack.c.b16 %v471, %v469
        %v476 = vpack.c.b16 %v472, %v470
        %vm481 = vcmask 261120
        %v483 = vsel %vm481, %v444, 0
        %485 = vmatprep.subr.bf16.mxu0 %v474
        %486 = vmatpush1.bf16.msra.mxu0 %v473
        %487 = vmatprep.subr.bf16.mxu0 %v476
        %488 = vmatpush1.bf16.msra.mxu0 %v475
        %489 = vmatprep.subr.bf16.mxu0 0
        %490 = vmatpush1.bf16.msra.mxu0 0
        %491 = vmatprep.subr.bf16.mxu0 0
        %492 = vmatpush1.bf16.msra.mxu0 0
        %493 = vmatprep.subr.bf16.mxu0 0
        %494 = vmatpush1.bf16.msra.mxu0 0
        %495 = vmatprep.subr.bf16.mxu0 0
        %496 = vmatpush1.bf16.msra.mxu0 0
        %497 = vmatprep.subr.bf16.mxu0 0
        %498 = vmatpush1.bf16.msra.mxu0 0
        %499 = vmatprep.subr.bf16.mxu0 0
        %500 = vmatpush1.bf16.msra.mxu0 0
        %501 = vmatprep.subr.bf16.mxu0 0
        %502 = vmatpush1.bf16.msra.mxu0 0
        %503 = vmatprep.subr.bf16.mxu0 0
        %504 = vmatpush1.bf16.msra.mxu0 0
        %505 = vmatprep.subr.bf16.mxu0 0
        %506 = vmatpush1.bf16.msra.mxu0 0
        %507 = vmatprep.subr.bf16.mxu0 0
        %508 = vmatpush1.bf16.msra.mxu0 0
        %509 = vmatprep.subr.bf16.mxu0 0
        %510 = vmatpush1.bf16.msra.mxu0 0
        %511 = vmatprep.subr.bf16.mxu0 0
        %512 = vmatpush1.bf16.msra.mxu0 0
        %513 = vmatprep.subr.bf16.mxu0 0
        %514 = vmatpush1.bf16.msra.mxu0 0
        %515 = vmatprep.subr.bf16.mxu0 0
        %516 = vmatpush1.bf16.msra.mxu0 0
        %517 = vmatprep.mubr.bf16.mxu0 0
        %518 = vmatmul.mubr.bf16.gmra.mrb[0].mxu0 %v483
        %v519 = vpop.f32.mrb[0].mxu0
        %v520 = vadd.f32 %v454, %v519
        %v521 = vpop.f32.mrb[0].mxu0
        %v522 = vadd.f32 %v458, %v521
        %v523 = vpop.f32.mrb[0].mxu0
        %v524 = vpop.f32.mrb[0].mxu0
        %525 = vdwg.mxu0
        %526 = vst [vmem:[%s313] sm:$0xff] %v520
        %527 = vst [vmem:[%s313 + $0x8] sm:$0xff] %v522
        %s528 = sand.u32 %s205, 1
        %s529 = scalar_lea.sflag [#allocation4], %s528
        %s530 = sand.u32 %s205, 1
        %s531 = smul.addr %s530, 16
        %s532 = scalar_lea.vmem [#allocation3], %s531
        // Predicated region
        $region53: #{_text_mlm_head_impl.1} parent=47 // pred_check
          %p533 = pneg %p215
        $region54: #{_text_mlm_head_impl.1} parent=47 // pred_check_branch
          %535 = sbr.rel (%p533) target = $region56
        $region55: #{_text_mlm_head_impl.1} parent=47 // pred_region
          %s536 = smul.u32 2, %s26
          %s538 = ssub.s32 256, 256
          %539 = vsyncadd %s529, %s538
          %s540 = smul.addr %s25, 2
          %s541 = sadd.s32 %s536, %s540
          %s542 = smul.addr %s541, 128
          %s543 = scalar_lea.hbm %s7, %s542
          %s545 = sshll.u32 %s532, 4
          %s546 = int_to_ptr.vmem [resolvable:$true] %s545
          %548 = dma.vmem_to_hbm [thread:$0]  %s546, 256, %s543, %s529
        $region56: #{_text_mlm_head_impl.1} parent=47 // pred_fallthru
          _
      $region48: #{_text_mlm_head_impl.1} parent=5 // pred_fallthru
        _
      %p549 = scmp.le.s32.totalorder 2, %s16
      // Predicated region
      $region57: #{_text_mlm_head_impl.1} parent=5 // pred_check
        %p550 = pneg %p549
      $region58: #{_text_mlm_head_impl.1} parent=5 // pred_check_branch
        %552 = sbr.rel (%p550) target = $region60
      $region59: #{_text_mlm_head_impl.1} parent=5 // pred_region
        %s553 = ssub.s32 %s16, 2
        // Predicated region
        $region61: #{_text_mlm_head_impl.1} parent=59 // pred_check
          %p554 = pneg %p221
        $region62: #{_text_mlm_head_impl.1} parent=59 // pred_check_branch
          %556 = sbr.rel (%p554) target = $region64
        $region63: #{_text_mlm_head_impl.1} parent=59 // pred_region
          %s557 = sand.u32 %s206, 1
          %s558 = scalar_lea.sflag [#allocation4], %s557
          %s559 = sand.u32 %s206, 1
          %s560 = smul.addr %s559, 16
          %s561 = scalar_lea.vmem [#allocation3], %s560
          %562 = dma.done %s558, 256
        $region64: #{_text_mlm_head_impl.1} parent=59 // pred_fallthru
          _
      $region60: #{_text_mlm_head_impl.1} parent=5 // pred_fallthru
        _
    $region6: #{_text_mlm_head_impl.1} parent=1 // loop_footer
      %s20 = sadd.s32 1, %s16
    $region7: #{_text_mlm_head_impl.1} parent=1 // loop_footer_branch
      %15 = sbr.rel target = $region3
    $region8: #{_text_mlm_head_impl.1} parent=1 // loop_exit
      _
    %563 = vsyncpa [#allocation4], 1
    %s564 = scalar_lea.sflag [#allocation4], 1
    %565 = vsyncpa %s564, 1

</llo_original>
